<compile_context>
chip_gen: v5e
topology: v5e:2x2
jax: 0.10.0
libtpu: 0.0.40
codegen_flags: <defaults>
</compile_context>

<pallas_src>
import math

import numpy as np
import jax
import jax.numpy as jnp
from jax.experimental import pallas as pl
from jax.experimental.pallas import tpu as pltpu

POOL_SIZES = [1, 2, 3, 6]
BN_EPS = 1e-5


# ----------------------------------------------------------------------------
# Host-side construction of the fused linear operators.
# ----------------------------------------------------------------------------
def adaptive_pool_matrix(out_size: int, in_size: int) -> np.ndarray:
    """P[i, h] = 1/len(bin_i) if h in bin_i else 0 (PyTorch AdaptiveAvgPool bins)."""
    P = np.zeros((out_size, in_size), np.float32)
    for i in range(out_size):
        start = (i * in_size) // out_size
        end = -((-(i + 1) * in_size) // out_size)  # ceil
        P[i, start:end] = 1.0 / (end - start)
    return P


def bilinear_upsample_matrix(out_size: int, in_size: int) -> np.ndarray:
    """U[o, i] weights for F.interpolate(mode='bilinear', align_corners=False)."""
    U = np.zeros((out_size, in_size), np.float32)
    if in_size == 1:
        U[:, 0] = 1.0
        return U
    scale = in_size / out_size
    for o in range(out_size):
        src = max((o + 0.5) * scale - 0.5, 0.0)
        i0 = min(int(math.floor(src)), in_size - 1)
        i1 = min(i0 + 1, in_size - 1)
        l1 = src - i0
        U[o, i0] += 1.0 - l1
        U[o, i1] += l1
    return U


def make_ppm_operators(key, in_channels: int, out_channels: int, H: int, W: int):
    """Fused operators: pooling Q_all^T, folded conv W_all, bias/mask, upsample V_cat^T."""
    co = out_channels // 4
    S = H * W
    n_scales = len(POOL_SIZES)
    C_out = co * n_scales
    K_total = sum(ps * ps for ps in POOL_SIZES)   # 1 + 4 + 9 + 36 = 50

    q_all = np.zeros((K_total, S), np.float32)    # stacked pooling operators
    v_cat = np.zeros((S, K_total), np.float32)    # side-by-side upsample operators
    w_all = np.zeros((in_channels, C_out), np.float32)
    bias_ko = np.zeros((K_total, C_out), np.float32)
    mask_ko = np.zeros((K_total, C_out), np.float32)

    keys = jax.random.split(key, n_scales)
    k_off = 0
    for s, (ps, k) in enumerate(zip(POOL_SIZES, keys)):
        ks = ps * ps
        Ph = adaptive_pool_matrix(ps, H)
        Pw = adaptive_pool_matrix(ps, W)
        q_all[k_off:k_off + ks] = np.kron(Ph, Pw)            # (ps*ps, S)
        Uh = bilinear_upsample_matrix(H, ps)
        Uw = bilinear_upsample_matrix(W, ps)
        v_cat[:, k_off:k_off + ks] = np.kron(Uh, Uw)         # (S, ps*ps)

        # Conv2d(in_channels, co, 1, bias=False), deterministic init.
        w_conv = np.asarray(jax.random.normal(k, (co, in_channels), jnp.float32)) * 0.1
        # BatchNorm2d(co) inference-mode params (fresh init), folded into the conv.
        gamma = np.ones(co, np.float32)
        beta = np.zeros(co, np.float32)
        r_mean = np.zeros(co, np.float32)
        r_var = np.ones(co, np.float32)
        bn_scale = gamma / np.sqrt(r_var + BN_EPS)

        w_all[:, s * co:(s + 1) * co] = (w_conv * bn_scale[:, None]).T
        bias_ko[k_off:k_off + ks, s * co:(s + 1) * co] = (beta - r_mean * bn_scale)[None, :]
        mask_ko[k_off:k_off + ks, s * co:(s + 1) * co] = 1.0
        k_off += ks

    return {
        "q_t": jnp.asarray(q_all.T),    # (S, K)        pooling (transposed)
        "w_all": jnp.asarray(w_all),    # (C_in, C_out) folded 1x1 conv, all scales
        "bias": jnp.asarray(bias_ko),   # (K, C_out)    folded BN bias, block layout
        "mask": jnp.asarray(mask_ko),   # (K, C_out)    block-diagonal scale mask
        "v_t": jnp.asarray(v_cat.T),    # (K, S)        bilinear upsample (transposed)
    }


# ----------------------------------------------------------------------------
# Pallas kernel: Bt images per grid step, all 4 scales fused into 3 matmuls.
# ----------------------------------------------------------------------------
def ppm_kernel(x_ref, q_ref, w_ref, bias_ref, mask_ref, v_ref, o_ref):
    Bt, C, S = x_ref.shape
    K = q_ref.shape[1]

    # (1) Adaptive avg-pool for ALL pyramid scales at once (contraction over S).
    #     Batch and C_in are merged into the MXU M dimension -> one 2-D matmul.
    x2 = x_ref[...].reshape(Bt * C, S)                                   # bf16
    p = jnp.dot(x2, q_ref[...], preferred_element_type=jnp.float32)      # (Bt*C, K) f32
    p = p.reshape(Bt, C, K).astype(jnp.bfloat16)

    # (2) Fused 1x1 conv + folded BN for all scales (contraction over C_in).
    z = jnp.einsum("bck,co->bko", p, w_ref[...],
                   preferred_element_type=jnp.float32)                   # (Bt, K, C_out) f32

    # (3) Bias + ReLU first, THEN block-diagonal mask zeroes cross-scale entries
    #     so garbage cannot leak through the shared upsample matmul.
    y = (jnp.maximum(z + bias_ref[...], 0.0) * mask_ref[...]).astype(jnp.bfloat16)

    # (4) Bilinear upsample for all scales (contraction over K); lane-dense store.
    out = jnp.einsum("bko,ks->bos", y, v_ref[...],
                     preferred_element_type=jnp.float32)                 # (Bt, C_out, S) f32
    o_ref[...] = out.astype(o_ref.dtype)


def _pick_batch_tile(B: int) -> int:
    # Batch several images per grid step (amortize per-step pipeline overhead)
    # while keeping >=2 steps on the "parallel" batch axis when possible so both
    # v7x TensorCores get work.
    for bt in (8, 4, 2):
        if B % bt == 0 and B // bt >= 2:
            return bt
    return 1


def pyramid_pooling_forward(x_nchw, ops, batch_tile=None):
    """x_nchw: (B, C_in, H, W) float32 -> (B, out_channels, H, W) float32."""
    B, C, H, W = x_nchw.shape
    S = H * W
    C_out = ops["w_all"].shape[1]

    # Channels-first: (B, C_in, S) directly from NCHW; S lands on the 128-lane
    # axis and the output comes back in NCHW order -> no transposes anywhere.
    x_t = x_nchw.reshape(B, C, S).astype(jnp.bfloat16)

    q_t = ops["q_t"].astype(jnp.bfloat16)      # (S, K)
    w_all = ops["w_all"].astype(jnp.bfloat16)  # (C_in, C_out)
    v_t = ops["v_t"].astype(jnp.bfloat16)      # (K, S)
    bias = ops["bias"]                         # (K, C_out) f32
    mask = ops["mask"]                         # (K, C_out) f32

    Bt = batch_tile if batch_tile is not None else _pick_batch_tile(B)
    assert B % Bt == 0
    grid = (B // Bt,)

    def const_spec(shape):
        # Full-array constant operand; block index never changes across the grid,
        # so Pallas only DMAs it once.
        return pl.BlockSpec(shape, lambda b: (0, 0))

    out_flat = pl.pallas_call(
        ppm_kernel,
        grid=grid,
        in_specs=[
            pl.BlockSpec((Bt, C, S), lambda b: (b, 0, 0)),
            const_spec(q_t.shape),
            const_spec(w_all.shape),
            const_spec(bias.shape),
            const_spec(mask.shape),
            const_spec(v_t.shape),
        ],
        out_specs=pl.BlockSpec((Bt, C_out, S), lambda b: (b, 0, 0)),
        out_shape=jax.ShapeDtypeStruct((B, C_out, S), jnp.float32),
        compiler_params=pltpu.CompilerParams(dimension_semantics=("parallel",)),
    )(x_t, q_t, w_all, bias, mask, v_t)

    return out_flat.reshape(B, C_out, H, W)


# ----------------------------------------------------------------------------
# Pure-JAX f32 reference: per-scale UNFUSED path (pool -> conv+BN -> ReLU ->
# upsample -> concat).  Independently validates the fusion + masking logic.
# ----------------------------------------------------------------------------
def ppm_reference(x_nchw, ops):
    B, C, H, W = x_nchw.shape
    S = H * W
    co = ops["w_all"].shape[1] // len(POOL_SIZES)
    xt = x_nchw.reshape(B, C, S)
    outs = []
    k_off = 0
    for s, ps in enumerate(POOL_SIZES):
        ks = ps * ps
        q_s = ops["q_t"][:, k_off:k_off + ks]                       # (S, ks)
        w_s = ops["w_all"][:, s * co:(s + 1) * co]                  # (C, co)
        b_s = ops["bias"][k_off:k_off + ks, s * co:(s + 1) * co]    # (ks, co)
        v_s = ops["v_t"][k_off:k_off + ks, :]                       # (ks, S)
        p = jnp.einsum("bcs,sk->bck", xt, q_s)
        z = jnp.einsum("bck,co->bko", p, w_s)
        y = jnp.maximum(z + b_s, 0.0)
        outs.append(jnp.einsum("bko,ks->bos", y, v_s))
        k_off += ks
    return jnp.concatenate(outs, axis=1).reshape(B, -1, H, W)


# ----------------------------------------------------------------------------
if __name__ == "__main__":
    key = jax.random.PRNGKey(0)
    kx, kp = jax.random.split(key)

    B, C_in, H, W = 2, 8, 16, 16
    C_out = 16  # 4 channels per pyramid scale

    x = jax.random.normal(kx, (B, C_in, H, W), jnp.float32)
    ops = make_ppm_operators(kp, C_in, C_out, H, W)

    y = pyramid_pooling_forward(x, ops)
    y = jax.block_until_ready(y)

    assert y.shape == (B, C_out, H, W), y.shape
    assert bool(jnp.all(jnp.isfinite(y)))

    # bf16-tolerant check against the per-scale f32 reference.
    ref = ppm_reference(x, ops)
    err = float(jnp.max(jnp.abs(y - ref)))
    scale = float(jnp.max(jnp.abs(ref))) + 1e-6
    assert err <= 1e-1 * scale + 1e-3, (err, scale)

    print("KERNEL_OK")
</pallas_src>

<mosaic_0001>
module attributes {stable_mosaic.version = 11 : i64} {
  func.func @ppm_kernel(%arg0: i32, %arg1: memref<1x8x256xbf16, #tpu.memory_space<vmem>>, %arg2: memref<256x50xbf16, #tpu.memory_space<vmem>>, %arg3: memref<8x16xbf16, #tpu.memory_space<vmem>>, %arg4: memref<50x16xf32, #tpu.memory_space<vmem>>, %arg5: memref<50x16xf32, #tpu.memory_space<vmem>>, %arg6: memref<50x256xbf16, #tpu.memory_space<vmem>>, %arg7: memref<1x16x256xf32, #tpu.memory_space<vmem>>) attributes {dimension_semantics = [#tpu.dimension_semantics<parallel>], iteration_bounds = array<i64: 2>, scalar_prefetch = 0 : i64, scratch_operands = 0 : i64, tpu.core_type = #tpu.core_type<tc>, window_params = [{transform_indices = @transform_0, window_bounds = array<i64: 1, 8, 256>}, {pipeline_mode = #tpu.pipeline_mode<synchronous>, transform_indices = @transform_1, window_bounds = array<i64: 256, 50>}, {pipeline_mode = #tpu.pipeline_mode<synchronous>, transform_indices = @transform_2, window_bounds = array<i64: 8, 16>}, {pipeline_mode = #tpu.pipeline_mode<synchronous>, transform_indices = @transform_3, window_bounds = array<i64: 50, 16>}, {pipeline_mode = #tpu.pipeline_mode<synchronous>, transform_indices = @transform_4, window_bounds = array<i64: 50, 16>}, {pipeline_mode = #tpu.pipeline_mode<synchronous>, transform_indices = @transform_5, window_bounds = array<i64: 50, 256>}, {transform_indices = @transform_6, window_bounds = array<i64: 1, 16, 256>}]} {
    %c0 = arith.constant 0 : index
    %c0_0 = arith.constant 0 : index
    %c0_1 = arith.constant 0 : index
    %0 = vector.load %arg1[%c0, %c0_0, %c0_1] : memref<1x8x256xbf16, #tpu.memory_space<vmem>>, vector<1x8x256xbf16>
    %1 = vector.shape_cast %0 : vector<1x8x256xbf16> to vector<8x256xbf16>
    %c0_2 = arith.constant 0 : index
    %c0_3 = arith.constant 0 : index
    %2 = vector.load %arg2[%c0_2, %c0_3] : memref<256x50xbf16, #tpu.memory_space<vmem>>, vector<256x50xbf16>
    %cst = arith.constant dense<0.000000e+00> : vector<8x50xf32>
    %3 = tpu.matmul %1, %2, %cst {dimension_numbers = #tpu.dot_dimension_numbers<[1], [0], [0], [1], [0, 0, 1, 1], [], []>} : vector<8x256xbf16>, vector<256x50xbf16>, vector<8x50xf32> -> vector<8x50xf32>
    %4 = vector.shape_cast %3 : vector<8x50xf32> to vector<1x8x50xf32>
    %5 = arith.truncf %4 : vector<1x8x50xf32> to vector<1x8x50xbf16>
    %c0_4 = arith.constant 0 : index
    %c0_5 = arith.constant 0 : index
    %6 = vector.load %arg3[%c0_4, %c0_5] : memref<8x16xbf16, #tpu.memory_space<vmem>>, vector<8x16xbf16>
    "tpu.trace_start"() <{level = 10 : i32, message = "bck,co->bko"}> : () -> ()
    %cst_6 = arith.constant dense<0.000000e+00> : vector<1x50x16xf32>
    %7 = tpu.matmul %5, %6, %cst_6 {dimension_numbers = #tpu.dot_dimension_numbers<[1], [0], [0, 2], [1], [0, 0, 0, 2, 1, 1], [], []>} : vector<1x8x50xbf16>, vector<8x16xbf16>, vector<1x50x16xf32> -> vector<1x50x16xf32>
    "tpu.trace_stop"() : () -> ()
    %c0_7 = arith.constant 0 : index
    %c0_8 = arith.constant 0 : index
    %8 = vector.load %arg4[%c0_7, %c0_8] : memref<50x16xf32, #tpu.memory_space<vmem>>, vector<50x16xf32>
    %9 = vector.shape_cast %8 : vector<50x16xf32> to vector<1x50x16xf32>
    %10 = arith.addf %7, %9 : vector<1x50x16xf32>
    %cst_9 = arith.constant 0.000000e+00 : f32
    %11 = vector.broadcast %cst_9 : f32 to vector<1x50x16xf32>
    %12 = arith.maximumf %10, %11 : vector<1x50x16xf32>
    %c0_10 = arith.constant 0 : index
    %c0_11 = arith.constant 0 : index
    %13 = vector.load %arg5[%c0_10, %c0_11] : memref<50x16xf32, #tpu.memory_space<vmem>>, vector<50x16xf32>
    %14 = vector.shape_cast %13 : vector<50x16xf32> to vector<1x50x16xf32>
    %15 = arith.mulf %12, %14 : vector<1x50x16xf32>
    %16 = arith.truncf %15 : vector<1x50x16xf32> to vector<1x50x16xbf16>
    %c0_12 = arith.constant 0 : index
    %c0_13 = arith.constant 0 : index
    %17 = vector.load %arg6[%c0_12, %c0_13] : memref<50x256xbf16, #tpu.memory_space<vmem>>, vector<50x256xbf16>
    "tpu.trace_start"() <{level = 10 : i32, message = "bko,ks->bos"}> : () -> ()
    %cst_14 = arith.constant dense<0.000000e+00> : vector<1x16x256xf32>
    %18 = tpu.matmul %16, %17, %cst_14 {dimension_numbers = #tpu.dot_dimension_numbers<[1], [0], [0, 2], [1], [0, 0, 0, 2, 1, 1], [], []>} : vector<1x50x16xbf16>, vector<50x256xbf16>, vector<1x16x256xf32> -> vector<1x16x256xf32>
    "tpu.trace_stop"() : () -> ()
    %c0_15 = arith.constant 0 : index
    %c0_16 = arith.constant 0 : index
    %c0_17 = arith.constant 0 : index
    %19 = vector.load %arg7[%c0_15, %c0_16, %c0_17] : memref<1x16x256xf32, #tpu.memory_space<vmem>>, vector<1x16x256xf32>
    tpu.vector_store %arg7[%c0_15, %c0_16, %c0_17], %18 {strides = array<i32>} : memref<1x16x256xf32, #tpu.memory_space<vmem>>, vector<1x16x256xf32>,
    return
  }
  func.func @transform_0(%arg0: i32) -> (i32, i32, i32) {
    %c0_i32 = arith.constant 0 : i32
    %c0_i32_0 = arith.constant 0 : i32
    %c0_i32_1 = arith.constant 0 : i32
    return %arg0, %c0_i32, %c0_i32_0 : i32, i32, i32
  }
  func.func @transform_1(%arg0: i32) -> (i32, i32) {
    %c0_i32 = arith.constant 0 : i32
    %c0_i32_0 = arith.constant 0 : i32
    %c0_i32_1 = arith.constant 0 : i32
    return %c0_i32, %c0_i32_0 : i32, i32
  }
  func.func @transform_2(%arg0: i32) -> (i32, i32) {
    %c0_i32 = arith.constant 0 : i32
    %c0_i32_0 = arith.constant 0 : i32
    %c0_i32_1 = arith.constant 0 : i32
    return %c0_i32, %c0_i32_0 : i32, i32
  }
  func.func @transform_3(%arg0: i32) -> (i32, i32) {
    %c0_i32 = arith.constant 0 : i32
    %c0_i32_0 = arith.constant 0 : i32
    %c0_i32_1 = arith.constant 0 : i32
    return %c0_i32, %c0_i32_0 : i32, i32
  }
  func.func @transform_4(%arg0: i32) -> (i32, i32) {
    %c0_i32 = arith.constant 0 : i32
    %c0_i32_0 = arith.constant 0 : i32
    %c0_i32_1 = arith.constant 0 : i32
    return %c0_i32, %c0_i32_0 : i32, i32
  }
  func.func @transform_5(%arg0: i32) -> (i32, i32) {
    %c0_i32 = arith.constant 0 : i32
    %c0_i32_0 = arith.constant 0 : i32
    %c0_i32_1 = arith.constant 0 : i32
    return %c0_i32, %c0_i32_0 : i32, i32
  }
  func.func @transform_6(%arg0: i32) -> (i32, i32, i32) {
    %c0_i32 = arith.constant 0 : i32
    %c0_i32_0 = arith.constant 0 : i32
    %c0_i32_1 = arith.constant 0 : i32
    return %arg0, %c0_i32, %c0_i32_0 : i32, i32, i32
  }
}

</mosaic_0001>

<llo_original>
// kernel: tpu_custom_call.1
$region0: #{tpu_custom_call.1}
  #allocation0 [shape = 'u32[]', space=smem, size = 0x4, offset = 0x4, fixed_abs, tag = 'smem constant byte address 0x4 - core index']
  #allocation1 [shape = 'u32[72,128]{1,0:T(1,128)}', space=vmem, size = 0x9000, scoped, tag = 'internal scratch']
  %s0 = inlined_call_operand.vmem [shape: bf16[2,8,256], index: 0, kind: input, shape index: {}]
  %s1 = inlined_call_operand.vmem [shape: bf16[256,50], index: 1, kind: input, shape index: {}]
  %s2 = inlined_call_operand.vmem [shape: bf16[8,16], index: 2, kind: input, shape index: {}]
  %s3 = inlined_call_operand.vmem [shape: f32[50,16], index: 3, kind: input, shape index: {}]
  %s4 = inlined_call_operand.vmem [shape: f32[50,16], index: 4, kind: input, shape index: {}]
  %s5 = inlined_call_operand.vmem [shape: bf16[50,256], index: 5, kind: input, shape index: {}]
  %s6 = inlined_call_operand.hbm [shape: f32[2,16,256], index: 6, kind: output, shape index: {}]
  %s7 = sld [smem:[#allocation0]]
  $region57: #{tpu_custom_call.1} parent=0
    _
  %s9 = ssub.s32 1, %s7
  %s10 = scalar_select 0, %s9, %s7
  $region1: #{tpu_custom_call.1} parent=0
    #allocation2 [shape = 'u8[32768]{0}', space=vmem, size = 0x8000, scoped, tag = 'output window, operand 0']
    #allocation3 [shape = 's32[2]{0}', space=sflag, size = 0x8, scoped, tag = 'scoped memory for tpu_custom_call.1']
    %11 = vsyncpa [#allocation3], 0
    %s12 = scalar_lea.sflag [#allocation3], 1
    %13 = vsyncpa %s12, 0
    loop: start=0, step=1, limit=4
    $region2: #{tpu_custom_call.1} parent=1 // loop_pre_header
      _
    $region3: #{tpu_custom_call.1} parent=1 // loop_header
      %s15 = sphi 0, %s19
      %p16 = scmp.ge.s32.totalorder %s15, 4
      %s25 = sphi 0, %s27
      %s28 = sphi 0, %s25
      %s29 = sphi 0, %s28
      %s45 = sphi 0, %s29
      %s49 = sphi 0, %s49
      %s51 = sphi 0, %s49
      %s52 = sphi 0, %s51
      %s66 = sphi 0, %s52
      %s70 = sphi 0, %s70
      %s72 = sphi 0, %s70
      %s73 = sphi 0, %s72
      %s87 = sphi 0, %s73
      %s91 = sphi 0, %s91
      %s93 = sphi 0, %s91
      %s94 = sphi 0, %s93
      %s108 = sphi 0, %s94
      %s112 = sphi 0, %s112
      %s114 = sphi 0, %s112
      %s115 = sphi 0, %s114
      %s129 = sphi 0, %s115
      %s133 = sphi 0, %s133
      %s135 = sphi 0, %s133
      %s136 = sphi 0, %s135
      %s150 = sphi 0, %s136
      %s156 = sphi 0, %s158
      %s159 = sphi 0, %s156
      %s160 = sphi 0, %s159
      %s176 = sphi 0, %s160
    $region4: #{tpu_custom_call.1} parent=1 // loop_header_branch
      %18 = sbr.rel (%p16) target = $region8
    $region5: #{tpu_custom_call.1} parent=1 // loop_body
      %s20 = ssub.s32 %s15, 1
      %s21 = ssub.s32 %s15, 2
      %s22 = sadd.s32 %s15, 1
      %s23 = ssub.s32 %s15, %s22
      %p24 = scmp.eq.s32.totalorder %s23, 0
      %s26 = sadd.s32 %s25, 1
      %s27 = scalar_select %p24, %s25, %s26
      %p30 = pneg %p24
      %p31 = scmp.eq.s32.totalorder %s15, 1
      %p32 = por %p30, %p31
      %p33 = scmp.ne.s32.totalorder %s25, %s28
      %p34 = scmp.eq.s32.totalorder %s15, 0
      %p35 = por %p33, %p34
      %p36 = scmp.ne.s32.totalorder %s25, %s28
      %p37 = scmp.eq.s32.totalorder %s20, 1
      %p38 = por %p36, %p37
      %p39 = scmp.ne.s32.totalorder %s28, %s29
      %p40 = scmp.eq.s32.totalorder %s20, 0
      %p41 = por %p39, %p40
      %p42 = scmp.ne.s32.totalorder %s28, %s29
      %p43 = scmp.eq.s32.totalorder %s21, 1
      %p44 = por %p42, %p43
      %p46 = scmp.ne.s32.totalorder %s29, %s45
      %p47 = scmp.eq.s32.totalorder %s21, 0
      %p48 = por %p46, %p47
      %s50 = sadd.s32 %s49, 1
      %p53 = scmp.eq.s32.totalorder %s15, 1
      %p54 = scmp.ne.s32.totalorder %s49, %s51
      %p55 = scmp.eq.s32.totalorder %s15, 0
      %p56 = por %p54, %p55
      %p57 = scmp.ne.s32.totalorder %s49, %s51
      %p58 = scmp.eq.s32.totalorder %s20, 1
      %p59 = por %p57, %p58
      %p60 = scmp.ne.s32.totalorder %s51, %s52
      %p61 = scmp.eq.s32.totalorder %s20, 0
      %p62 = por %p60, %p61
      %p63 = scmp.ne.s32.totalorder %s51, %s52
      %p64 = scmp.eq.s32.totalorder %s21, 1
      %p65 = por %p63, %p64
      %p67 = scmp.ne.s32.totalorder %s52, %s66
      %p68 = scmp.eq.s32.totalorder %s21, 0
      %p69 = por %p67, %p68
      %s71 = sadd.s32 %s70, 1
      %p74 = scmp.eq.s32.totalorder %s15, 1
      %p75 = scmp.ne.s32.totalorder %s70, %s72
      %p76 = scmp.eq.s32.totalorder %s15, 0
      %p77 = por %p75, %p76
      %p78 = scmp.ne.s32.totalorder %s70, %s72
      %p79 = scmp.eq.s32.totalorder %s20, 1
      %p80 = por %p78, %p79
      %p81 = scmp.ne.s32.totalorder %s72, %s73
      %p82 = scmp.eq.s32.totalorder %s20, 0
      %p83 = por %p81, %p82
      %p84 = scmp.ne.s32.totalorder %s72, %s73
      %p85 = scmp.eq.s32.totalorder %s21, 1
      %p86 = por %p84, %p85
      %p88 = scmp.ne.s32.totalorder %s73, %s87
      %p89 = scmp.eq.s32.totalorder %s21, 0
      %p90 = por %p88, %p89
      %s92 = sadd.s32 %s91, 1
      %p95 = scmp.eq.s32.totalorder %s15, 1
      %p96 = scmp.ne.s32.totalorder %s91, %s93
      %p97 = scmp.eq.s32.totalorder %s15, 0
      %p98 = por %p96, %p97
      %p99 = scmp.ne.s32.totalorder %s91, %s93
      %p100 = scmp.eq.s32.totalorder %s20, 1
      %p101 = por %p99, %p100
      %p102 = scmp.ne.s32.totalorder %s93, %s94
      %p103 = scmp.eq.s32.totalorder %s20, 0
      %p104 = por %p102, %p103
      %p105 = scmp.ne.s32.totalorder %s93, %s94
      %p106 = scmp.eq.s32.totalorder %s21, 1
      %p107 = por %p105, %p106
      %p109 = scmp.ne.s32.totalorder %s94, %s108
      %p110 = scmp.eq.s32.totalorder %s21, 0
      %p111 = por %p109, %p110
      %s113 = sadd.s32 %s112, 1
      %p116 = scmp.eq.s32.totalorder %s15, 1
      %p117 = scmp.ne.s32.totalorder %s112, %s114
      %p118 = scmp.eq.s32.totalorder %s15, 0
      %p119 = por %p117, %p118
      %p120 = scmp.ne.s32.totalorder %s112, %s114
      %p121 = scmp.eq.s32.totalorder %s20, 1
      %p122 = por %p120, %p121
      %p123 = scmp.ne.s32.totalorder %s114, %s115
      %p124 = scmp.eq.s32.totalorder %s20, 0
      %p125 = por %p123, %p124
      %p126 = scmp.ne.s32.totalorder %s114, %s115
      %p127 = scmp.eq.s32.totalorder %s21, 1
      %p128 = por %p126, %p127
      %p130 = scmp.ne.s32.totalorder %s115, %s129
      %p131 = scmp.eq.s32.totalorder %s21, 0
      %p132 = por %p130, %p131
      %s134 = sadd.s32 %s133, 1
      %p137 = scmp.eq.s32.totalorder %s15, 1
      %p138 = scmp.ne.s32.totalorder %s133, %s135
      %p139 = scmp.eq.s32.totalorder %s15, 0
      %p140 = por %p138, %p139
      %p141 = scmp.ne.s32.totalorder %s133, %s135
      %p142 = scmp.eq.s32.totalorder %s20, 1
      %p143 = por %p141, %p142
      %p144 = scmp.ne.s32.totalorder %s135, %s136
      %p145 = scmp.eq.s32.totalorder %s20, 0
      %p146 = por %p144, %p145
      %p147 = scmp.ne.s32.totalorder %s135, %s136
      %p148 = scmp.eq.s32.totalorder %s21, 1
      %p149 = por %p147, %p148
      %p151 = scmp.ne.s32.totalorder %s136, %s150
      %p152 = scmp.eq.s32.totalorder %s21, 0
      %p153 = por %p151, %p152
      %s154 = ssub.s32 %s15, %s22
      %p155 = scmp.eq.s32.totalorder %s154, 0
      %s157 = sadd.s32 %s156, 1
      %s158 = scalar_select %p155, %s156, %s157
      %p161 = pneg %p155
      %p162 = scmp.eq.s32.totalorder %s15, 1
      %p163 = por %p161, %p162
      %p164 = scmp.ne.s32.totalorder %s156, %s159
      %p165 = scmp.eq.s32.totalorder %s15, 0
      %p166 = por %p164, %p165
      %p167 = scmp.ne.s32.totalorder %s156, %s159
      %p168 = scmp.eq.s32.totalorder %s20, 1
      %p169 = por %p167, %p168
      %p170 = scmp.ne.s32.totalorder %s159, %s160
      %p171 = scmp.eq.s32.totalorder %s20, 0
      %p172 = por %p170, %p171
      %p173 = scmp.ne.s32.totalorder %s159, %s160
      %p174 = scmp.eq.s32.totalorder %s21, 1
      %p175 = por %p173, %p174
      %p177 = scmp.ne.s32.totalorder %s160, %s176
      %p178 = scmp.eq.s32.totalorder %s21, 0
      %p179 = por %p177, %p178
      %p180 = scmp.le.s32.totalorder 1, %s15
      %p181 = scmp.lt.s32.totalorder %s15, 3
      %p182 = pnand %p180, %p181
      %p183 = pneg %p182
      // Predicated region
      $region9: #{tpu_custom_call.1} parent=5 // pred_check
        _
      $region10: #{tpu_custom_call.1} parent=5 // pred_check_branch
        %185 = sbr.rel (%p182) target = $region12
      $region11: #{tpu_custom_call.1} parent=5 // pred_region
        %s186 = ssub.s32 %s15, 1
        // Predicated region
        $region13: #{tpu_custom_call.1} parent=11 // pred_check
          %p187 = pneg %p62
        $region14: #{tpu_custom_call.1} parent=11 // pred_check_branch
          %189 = sbr.rel (%p187) target = $region16
        $region15: #{tpu_custom_call.1} parent=11 // pred_region
          _
        $region16: #{tpu_custom_call.1} parent=11 // pred_fallthru
          _
        // Predicated region
        $region17: #{tpu_custom_call.1} parent=11 // pred_check
          %p190 = pneg %p83
        $region18: #{tpu_custom_call.1} parent=11 // pred_check_branch
          %192 = sbr.rel (%p190) target = $region20
        $region19: #{tpu_custom_call.1} parent=11 // pred_region
          _
        $region20: #{tpu_custom_call.1} parent=11 // pred_fallthru
          _
        // Predicated region
        $region21: #{tpu_custom_call.1} parent=11 // pred_check
          %p193 = pneg %p104
        $region22: #{tpu_custom_call.1} parent=11 // pred_check_branch
          %195 = sbr.rel (%p193) target = $region24
        $region23: #{tpu_custom_call.1} parent=11 // pred_region
          _
        $region24: #{tpu_custom_call.1} parent=11 // pred_fallthru
          _
        // Predicated region
        $region25: #{tpu_custom_call.1} parent=11 // pred_check
          %p196 = pneg %p125
        $region26: #{tpu_custom_call.1} parent=11 // pred_check_branch
          %198 = sbr.rel (%p196) target = $region28
        $region27: #{tpu_custom_call.1} parent=11 // pred_region
          _
        $region28: #{tpu_custom_call.1} parent=11 // pred_fallthru
          _
        // Predicated region
        $region29: #{tpu_custom_call.1} parent=11 // pred_check
          %p199 = pneg %p146
        $region30: #{tpu_custom_call.1} parent=11 // pred_check_branch
          %201 = sbr.rel (%p199) target = $region32
        $region31: #{tpu_custom_call.1} parent=11 // pred_region
          _
        $region32: #{tpu_custom_call.1} parent=11 // pred_fallthru
          _
      $region12: #{tpu_custom_call.1} parent=5 // pred_fallthru
        _
      %p202 = scmp.lt.s32.totalorder %s15, 2
      // Predicated region
      $region33: #{tpu_custom_call.1} parent=5 // pred_check
        %p203 = pneg %p202
      $region34: #{tpu_custom_call.1} parent=5 // pred_check_branch
        %205 = sbr.rel (%p203) target = $region36
      $region35: #{tpu_custom_call.1} parent=5 // pred_region
        // Predicated region
        $region37: #{tpu_custom_call.1} parent=35 // pred_check
          %p206 = pneg %p35
        $region38: #{tpu_custom_call.1} parent=35 // pred_check_branch
          %208 = sbr.rel (%p206) target = $region40
        $region39: #{tpu_custom_call.1} parent=35 // pred_region
          %p209 = scmp.lt.s32.totalorder %s15, 1
          %s210 = scalar_select %p209, %s15, 1
          %s211 = smul.addr %s210, 2
          %s212 = smul.addr %s211, 4
          %s213 = scalar_lea.vmem %s0, %s212
        $region40: #{tpu_custom_call.1} parent=35 // pred_fallthru
          _
      $region36: #{tpu_custom_call.1} parent=5 // pred_fallthru
        _
      %p214 = scmp.le.s32.totalorder 1, %s15
      %p215 = scmp.lt.s32.totalorder %s15, 3
      %p216 = pnand %p214, %p215
      %p217 = pneg %p216
      // Predicated region
      $region41: #{tpu_custom_call.1} parent=5 // pred_check
        _
      $region42: #{tpu_custom_call.1} parent=5 // pred_check_branch
        %219 = sbr.rel (%p216) target = $region44
      $region43: #{tpu_custom_call.1} parent=5 // pred_region
        %s220 = ssub.s32 %s15, 1
        %p221 = scmp.lt.s32.totalorder %s20, 1
        %s222 = scalar_select %p221, %s20, 1
        %s223 = smul.addr %s222, 2
        %s224 = smul.addr %s223, 4
        %s225 = scalar_lea.vmem %s0, %s224
        %p226 = pneg %p41
        %p227 = pneg %p38
        %p228 = pneg %p62
        %p229 = pneg %p59
        %p230 = pneg %p83
        %p231 = pneg %p80
        %p232 = pneg %p104
        %p233 = pneg %p101
        %p234 = pneg %p125
        %p235 = pneg %p122
        %p236 = pneg %p146
        %p237 = pneg %p143
        %p238 = pneg %p172
        %p239 = pneg %p169
        %s240 = sand.u32 %s159, 1
        %s241 = scalar_lea.sflag [#allocation3], %s240
        %s242 = sand.u32 %s159, 1
        %s243 = smul.addr %s242, 32
        %s244 = scalar_lea.vmem [#allocation2], %s243
        %p245 = scmp.lt.s32.totalorder %s20, 1
        %s246 = scalar_select %p245, %s20, 1
        %s247 = smul.addr %s246, 2
        %s248 = smul.addr %s247, 4
        %s249 = scalar_lea.vmem %s0, %s248
        %v251 = vld [vmem:[%s249] sm:$0xff]
        %v252 = vld [vmem:[%s1] sm:$0xf]
        %v253 = vld [vmem:[%s1 + $0x4] sm:$0xf]
        %v254 = vld [vmem:[%s1 + $0x8] sm:$0xf]
        %v255 = vld [vmem:[%s1 + $0xc] sm:$0xf]
        %v256 = vld [vmem:[%s1 + $0x10] sm:$0xf]
        %v257 = vld [vmem:[%s1 + $0x14] sm:$0xf]
        %v258 = vld [vmem:[%s1 + $0x18] sm:$0xf]
        %v259 = vld [vmem:[%s1 + $0x1c] sm:$0xf]
        %v260 = vld [vmem:[%s1 + $0x20] sm:$0xf]
        %v261 = vld [vmem:[%s1 + $0x24] sm:$0xf]
        %v262 = vld [vmem:[%s1 + $0x28] sm:$0xf]
        %v263 = vld [vmem:[%s1 + $0x2c] sm:$0xf]
        %v264 = vld [vmem:[%s1 + $0x30] sm:$0xf]
        %v265 = vld [vmem:[%s1 + $0x34] sm:$0xf]
        %v266 = vld [vmem:[%s1 + $0x38] sm:$0xf]
        %v267 = vld [vmem:[%s1 + $0x3c] sm:$0xf]
        %v268 = vld [vmem:[%s1 + $0x40] sm:$0xf]
        %v269 = vld [vmem:[%s1 + $0x44] sm:$0xf]
        %v270 = vld [vmem:[%s1 + $0x48] sm:$0xf]
        %v271 = vld [vmem:[%s1 + $0x4c] sm:$0xf]
        %v272 = vld [vmem:[%s1 + $0x50] sm:$0xf]
        %v273 = vld [vmem:[%s1 + $0x54] sm:$0xf]
        %v274 = vld [vmem:[%s1 + $0x58] sm:$0xf]
        %v275 = vld [vmem:[%s1 + $0x5c] sm:$0xf]
        %v276 = vld [vmem:[%s1 + $0x60] sm:$0xf]
        %v277 = vld [vmem:[%s1 + $0x64] sm:$0xf]
        %v278 = vld [vmem:[%s1 + $0x68] sm:$0xf]
        %v279 = vld [vmem:[%s1 + $0x6c] sm:$0xf]
        %v280 = vld [vmem:[%s1 + $0x70] sm:$0xf]
        %v281 = vld [vmem:[%s1 + $0x74] sm:$0xf]
        %v282 = vld [vmem:[%s1 + $0x78] sm:$0xf]
        %v283 = vld [vmem:[%s1 + $0x7c] sm:$0xf]
        %v285 = vunpack.c.l.b16 %v251
        %v286 = vunpack.c.h.b16 %v251
        %v287 = vpack.c.b16 %v285, %v285
        %v288 = vpack.c.b16 %v286, %v286
        %v323 = vunpack.c.l.b16 %v252
        %v324 = vunpack.c.l.b16 %v253
        %v325 = vunpack.c.l.b16 %v254
        %v326 = vunpack.c.l.b16 %v255
        %v327 = vunpack.c.l.b16 %v256
        %v328 = vunpack.c.l.b16 %v257
        %v329 = vunpack.c.l.b16 %v258
        %v330 = vunpack.c.l.b16 %v259
        %v331 = vunpack.c.l.b16 %v260
        %v332 = vunpack.c.l.b16 %v261
        %v333 = vunpack.c.l.b16 %v262
        %v334 = vunpack.c.l.b16 %v263
        %v335 = vunpack.c.l.b16 %v264
        %v336 = vunpack.c.l.b16 %v265
        %v337 = vunpack.c.l.b16 %v266
        %v338 = vunpack.c.l.b16 %v267
        %v339 = vunpack.c.l.b16 %v268
        %v340 = vunpack.c.l.b16 %v269
        %v341 = vunpack.c.l.b16 %v270
        %v342 = vunpack.c.l.b16 %v271
        %v343 = vunpack.c.l.b16 %v272
        %v344 = vunpack.c.l.b16 %v273
        %v345 = vunpack.c.l.b16 %v274
        %v346 = vunpack.c.l.b16 %v275
        %v347 = vunpack.c.l.b16 %v276
        %v348 = vunpack.c.l.b16 %v277
        %v349 = vunpack.c.l.b16 %v278
        %v350 = vunpack.c.l.b16 %v279
        %v351 = vunpack.c.l.b16 %v280
        %v352 = vunpack.c.l.b16 %v281
        %v353 = vunpack.c.l.b16 %v282
        %v354 = vunpack.c.l.b16 %v283
        %v355 = vpack.c.b16 %v324, %v323
        %v356 = vpack.c.b16 %v326, %v325
        %v357 = vpack.c.b16 %v328, %v327
        %v358 = vpack.c.b16 %v330, %v329
        %v359 = vpack.c.b16 %v332, %v331
        %v360 = vpack.c.b16 %v334, %v333
        %v361 = vpack.c.b16 %v336, %v335
        %v362 = vpack.c.b16 %v338, %v337
        %v363 = vpack.c.b16 %v340, %v339
        %v364 = vpack.c.b16 %v342, %v341
        %v365 = vpack.c.b16 %v344, %v343
        %v366 = vpack.c.b16 %v346, %v345
        %v367 = vpack.c.b16 %v348, %v347
        %v368 = vpack.c.b16 %v350, %v349
        %v369 = vpack.c.b16 %v352, %v351
        %v370 = vpack.c.b16 %v354, %v353
        %387 = vmatpush.bf16.msra.mxu0 %v362
        %388 = vmatpush.bf16.msra.mxu0 %v361
        %389 = vmatpush.bf16.msra.mxu0 %v360
        %390 = vmatpush.bf16.msra.mxu0 %v359
        %391 = vmatpush.bf16.msra.mxu0 %v358
        %392 = vmatpush.bf16.msra.mxu0 %v357
        %393 = vmatpush.bf16.msra.mxu0 %v356
        %394 = vmatpush.bf16.msra.mxu0 %v355
        %395 = vmatmul.bf16.gmra.mxu0 %v287
        %v396 = vpop.f32.mrf.mxu0
        %v397 = vadd.f32 0.0, %v396
        %v398 = vpop.f32.mrf.mxu0
        %399 = vdwg.mxu0
        %400 = vmatpush.bf16.msra.mxu0 %v370
        %401 = vmatpush.bf16.msra.mxu0 %v369
        %402 = vmatpush.bf16.msra.mxu0 %v368
        %403 = vmatpush.bf16.msra.mxu0 %v367
        %404 = vmatpush.bf16.msra.mxu0 %v366
        %405 = vmatpush.bf16.msra.mxu0 %v365
        %406 = vmatpush.bf16.msra.mxu0 %v364
        %407 = vmatpush.bf16.msra.mxu0 %v363
        %408 = vmatmul.bf16.gmra.mxu0 %v288
        %v409 = vpop.f32.mrf.mxu0
        %v410 = vadd.f32 %v397, %v409
        %v411 = vpop.f32.mrf.mxu0
        %412 = vdwg.mxu0
        %v413 = vpack.c.bf16 %v410, %v410
        %v414 = vld [vmem:[%s2] sm:$0xf]
        %v415 = vld [vmem:[%s3] sm:$0xff]
        %v416 = vld [vmem:[%s3 + $0x8] sm:$0xff]
        %v417 = vld [vmem:[%s3 + $0x10] sm:$0xff]
        %v418 = vld [vmem:[%s3 + $0x18] sm:$0xff]
        %v419 = vld [vmem:[%s3 + $0x20] sm:$0xff]
        %v420 = vld [vmem:[%s3 + $0x28] sm:$0xff]
        %v421 = vld [vmem:[%s3 + $0x30] sm:$0x3]
        %422 = vxpose.xlu0.c.b16.start [1/8] %v413, 128
        %423 = vxpose.xlu0.c.b16.cont [2/8] 0, 128
        %424 = vxpose.xlu0.c.b16.cont [3/8] 0, 128
        %425 = vxpose.xlu0.c.b16.cont [4/8] 0, 128
        %426 = vxpose.xlu0.c.b16.cont [5/8] 0, 128
        %427 = vxpose.xlu0.c.b16.cont [6/8] 0, 128
        %428 = vxpose.xlu0.c.b16.cont [7/8] 0, 128
        %429 = vxpose.xlu0.c.b16.end [8/8] 0, 128
        %v430 = vpop.trf.xlu0
        %v431 = vpop.trf.xlu0
        %v432 = vpop.trf.xlu0
        %v433 = vpop.trf.xlu0
        %v434 = vpop.trf.xlu0
        %v435 = vpop.trf.xlu0
        %v436 = vpop.trf.xlu0
        %v437 = vpop.trf.xlu0
        %vm438 = vcmask 64512
        %v440 = vsel %vm438, %v430, 0
        %v443 = vsel %vm438, %v431, 0
        %v446 = vsel %vm438, %v432, 0
        %v449 = vsel %vm438, %v433, 0
        %vm451 = vcmask 1043456
        %v453 = vsel %vm451, %v414, 0
        %455 = vmatpush.bf16.msra.mxu0 0
        %456 = vmatpush.bf16.msra.mxu0 0
        %457 = vmatpush.bf16.msra.mxu0 0
        %458 = vmatpush.bf16.msra.mxu0 0
        %459 = vmatpush.bf16.msra.mxu0 0
        %460 = vmatpush.bf16.msra.mxu0 0
        %461 = vmatpush.bf16.msra.mxu0 0
        %462 = vmatpush.bf16.msra.mxu0 %v453
        %463 = vmatmul.bf16.gmra.mxu0 %v440
        %v464 = vpop.f32.mrf.mxu0
        %v465 = vadd.f32 %v415, %v464
        %v466 = vpop.f32.mrf.mxu0
        %v467 = vadd.f32 %v416, %v466
        %468 = vmatmul.bf16.gmra.mxu0 %v443
        %v469 = vpop.f32.mrf.mxu0
        %v470 = vadd.f32 %v417, %v469
        %v471 = vpop.f32.mrf.mxu0
        %v472 = vadd.f32 %v418, %v471
        %473 = vmatmul.bf16.gmra.mxu0 %v446
        %v474 = vpop.f32.mrf.mxu0
        %v475 = vadd.f32 %v419, %v474
        %v476 = vpop.f32.mrf.mxu0
        %v477 = vadd.f32 %v420, %v476
        %478 = vmatmul.bf16.gmra.mxu0 %v449
        %v479 = vpop.f32.mrf.mxu0
        %v480 = vadd.f32 %v421, %v479
        %v481 = vpop.f32.mrf.mxu0
        %482 = vdwg.mxu0
        %v483 = vmax.f32 %v465, 0.0
        %v484 = vmax.f32 %v467, 0.0
        %v485 = vmax.f32 %v470, 0.0
        %v486 = vmax.f32 %v472, 0.0
        %v487 = vmax.f32 %v475, 0.0
        %v488 = vmax.f32 %v477, 0.0
        %v489 = vmax.f32 %v480, 0.0
        %v490 = vld [vmem:[%s4] sm:$0xff]
        %v491 = vld [vmem:[%s4 + $0x8] sm:$0xff]
        %v492 = vld [vmem:[%s4 + $0x10] sm:$0xff]
        %v493 = vld [vmem:[%s4 + $0x18] sm:$0xff]
        %v494 = vld [vmem:[%s4 + $0x20] sm:$0xff]
        %v495 = vld [vmem:[%s4 + $0x28] sm:$0xff]
        %v496 = vld [vmem:[%s4 + $0x30] sm:$0x3]
        %v497 = vmul.f32 %v483, %v490
        %v498 = vmul.f32 %v484, %v491
        %v499 = vmul.f32 %v485, %v492
        %v500 = vmul.f32 %v486, %v493
        %v501 = vmul.f32 %v487, %v494
        %v502 = vmul.f32 %v488, %v495
        %v503 = vmul.f32 %v489, %v496
        %v504 = vpack.c.bf16 %v498, %v497
        %v505 = vpack.c.bf16 %v500, %v499
        %v506 = vpack.c.bf16 %v502, %v501
        %v507 = vpack.c.bf16 %v503, %v503
        %v508 = vld [vmem:[%s5] sm:$0xff]
        %v509 = vld [vmem:[%s5 + $0x8] sm:$0xff]
        %v510 = vld [vmem:[%s5 + $0x10] sm:$0xff]
        %v511 = vld [vmem:[%s5 + $0x18] sm:$0xff]
        %v512 = vld [vmem:[%s5 + $0x20] sm:$0xff]
        %v513 = vld [vmem:[%s5 + $0x28] sm:$0xff]
        %v514 = vld [vmem:[%s5 + $0x30] sm:$0x11]
        %515 = vxpose.xlu0.c.b16.start [1/8] %v504, 128
        %516 = vxpose.xlu0.c.b16.cont [2/8] %v505, 128
        %517 = vxpose.xlu0.c.b16.cont [3/8] %v506, 128
        %518 = vxpose.xlu0.c.b16.cont [4/8] %v507, 128
        %519 = vxpose.xlu0.c.b16.cont [5/8] 0, 128
        %520 = vxpose.xlu0.c.b16.cont [6/8] 0, 128
        %521 = vxpose.xlu0.c.b16.cont [7/8] 0, 128
        %522 = vxpose.xlu0.c.b16.end [8/8] 0, 128
        %v523 = vpop.trf.xlu0
        %v524 = vpop.trf.xlu0
        %v525 = vpop.trf.xlu0
        %v526 = vpop.trf.xlu0
        %v527 = vpop.trf.xlu0
        %v528 = vpop.trf.xlu0
        %v529 = vpop.trf.xlu0
        %v530 = vpop.trf.xlu0
        %v538 = vunpack.c.l.b16 %v508
        %v539 = vunpack.c.h.b16 %v508
        %v540 = vunpack.c.l.b16 %v509
        %v541 = vunpack.c.h.b16 %v509
        %v542 = vunpack.c.l.b16 %v510
        %v543 = vunpack.c.h.b16 %v510
        %v544 = vunpack.c.l.b16 %v511
        %v545 = vunpack.c.h.b16 %v511
        %v546 = vunpack.c.l.b16 %v512
        %v547 = vunpack.c.h.b16 %v512
        %v548 = vunpack.c.l.b16 %v513
        %v549 = vunpack.c.h.b16 %v513
        %v550 = vunpack.c.l.b16 %v514
        %v551 = vunpack.c.h.b16 %v514
        %v552 = vpack.c.b16 %v540, %v538
        %v553 = vpack.c.b16 %v541, %v539
        %v554 = vpack.c.b16 %v544, %v542
        %v555 = vpack.c.b16 %v545, %v543
        %v556 = vpack.c.b16 %v548, %v546
        %v557 = vpack.c.b16 %v549, %v547
        %v558 = vpack.c.b16 %v550, %v550
        %v559 = vpack.c.b16 %v551, %v551
        %vm566 = vcmask 408576
        %v568 = vsel %vm566, %v523, 0
        %vm570 = vcmask 1040384
        %v572 = vsel %vm570, %v558, 0
        %v575 = vsel %vm570, %v559, 0
        %577 = vmatpush.bf16.msra.mxu0 0
        %578 = vmatpush.bf16.msra.mxu0 0
        %579 = vmatpush.bf16.msra.mxu0 0
        %580 = vmatpush.bf16.msra.mxu0 0
        %581 = vmatpush.bf16.msra.mxu0 %v572
        %582 = vmatpush.bf16.msra.mxu0 %v556
        %583 = vmatpush.bf16.msra.mxu0 %v554
        %584 = vmatpush.bf16.msra.mxu0 %v552
        %585 = vmatmul.bf16.gmra.mxu0 %v568
        %v586 = vpop.f32.mrf.mxu0
        %v587 = vadd.f32 0.0, %v586
        %v588 = vpop.f32.mrf.mxu0
        %v589 = vadd.f32 0.0, %v588
        %590 = vdwg.mxu0
        %591 = vmatpush.bf16.msra.mxu0 0
        %592 = vmatpush.bf16.msra.mxu0 0
        %593 = vmatpush.bf16.msra.mxu0 0
        %594 = vmatpush.bf16.msra.mxu0 0
        %595 = vmatpush.bf16.msra.mxu0 %v575
        %596 = vmatpush.bf16.msra.mxu0 %v557
        %597 = vmatpush.bf16.msra.mxu0 %v555
        %598 = vmatpush.bf16.msra.mxu0 %v553
        %599 = vmatmul.bf16.gmra.mxu0 %v568
        %v600 = vpop.f32.mrf.mxu0
        %v601 = vadd.f32 0.0, %v600
        %v602 = vpop.f32.mrf.mxu0
        %v603 = vadd.f32 0.0, %v602
        %604 = vdwg.mxu0
        %605 = vst [vmem:[%s244] sm:$0xff] %v587
        %606 = vst [vmem:[%s244 + $0x8] sm:$0xff] %v601
        %607 = vst [vmem:[%s244 + $0x10] sm:$0xff] %v589
        %608 = vst [vmem:[%s244 + $0x18] sm:$0xff] %v603
        %s609 = sand.u32 %s159, 1
        %s610 = scalar_lea.sflag [#allocation3], %s609
        %s611 = sand.u32 %s159, 1
        %s612 = smul.addr %s611, 32
        %s613 = scalar_lea.vmem [#allocation2], %s612
        // Predicated region
        $region45: #{tpu_custom_call.1} parent=43 // pred_check
          %p614 = pneg %p169
        $region46: #{tpu_custom_call.1} parent=43 // pred_check_branch
          %616 = sbr.rel (%p614) target = $region48
        $region47: #{tpu_custom_call.1} parent=43 // pred_region
          %618 = vsyncadd %s610, 0
          %s619 = smul.addr %s20, 4
          %s620 = smul.addr %s619, 8
          %s621 = scalar_lea.hbm %s6, %s620
          %s622 = sshll.u32 %s613, 4
          %s623 = int_to_ptr.vmem [resolvable:$true] %s622
          %s624 = sshll.u32 %s621, 4
          %s625 = int_to_ptr.hbm [resolvable:$true] %s624
          %630 = dma.vmem_to_hbm [thread:$0]  %s623, 512, %s625, %s610, 256, 256, 16
        $region48: #{tpu_custom_call.1} parent=43 // pred_fallthru
          _
      $region44: #{tpu_custom_call.1} parent=5 // pred_fallthru
        _
      %p631 = scmp.le.s32.totalorder 2, %s15
      // Predicated region
      $region49: #{tpu_custom_call.1} parent=5 // pred_check
        %p632 = pneg %p631
      $region50: #{tpu_custom_call.1} parent=5 // pred_check_branch
        %634 = sbr.rel (%p632) target = $region52
      $region51: #{tpu_custom_call.1} parent=5 // pred_region
        %s635 = ssub.s32 %s15, 2
        // Predicated region
        $region53: #{tpu_custom_call.1} parent=51 // pred_check
          %p636 = pneg %p175
        $region54: #{tpu_custom_call.1} parent=51 // pred_check_branch
          %638 = sbr.rel (%p636) target = $region56
        $region55: #{tpu_custom_call.1} parent=51 // pred_region
          %s639 = sand.u32 %s160, 1
          %s640 = scalar_lea.sflag [#allocation3], %s639
          %s641 = sand.u32 %s160, 1
          %s642 = smul.addr %s641, 32
          %s643 = scalar_lea.vmem [#allocation2], %s642
          %645 = dma.done %s640, 512
        $region56: #{tpu_custom_call.1} parent=51 // pred_fallthru
          _
      $region52: #{tpu_custom_call.1} parent=5 // pred_fallthru
        _
    $region6: #{tpu_custom_call.1} parent=1 // loop_footer
      %s19 = sadd.s32 1, %s15
    $region7: #{tpu_custom_call.1} parent=1 // loop_footer_branch
      %14 = sbr.rel target = $region3
    $region8: #{tpu_custom_call.1} parent=1 // loop_exit
      _
    %646 = vsyncpa [#allocation3], 1
    %s647 = scalar_lea.sflag [#allocation3], 1
    %648 = vsyncpa %s647, 1

</llo_original>
